<compile_context>
chip_gen: v5e
topology: v5e:2x2
jax: 0.10.0
libtpu: 0.0.40
codegen_flags: <defaults>
</compile_context>

<pallas_src>
import functools
import math

import jax
import jax.numpy as jnp
from jax.experimental import pallas as pl
from jax.experimental.pallas import tpu as pltpu


def _rgb_to_hsv_channels(r, g, b):
    """kornia.color.rgb_to_hsv math, elementwise on equally-shaped planes."""
    eps = jnp.float32(1e-8)
    maxc = jnp.maximum(jnp.maximum(r, g), b)
    minc = jnp.minimum(jnp.minimum(r, g), b)
    delta = maxc - minc

    v = maxc
    s = delta / (maxc + eps)

    delta_safe = jnp.where(delta == 0, jnp.float32(1.0), delta)
    rc = maxc - r
    gc = maxc - g
    bc = maxc - b
    h1 = bc - gc
    h2 = (rc - bc) + 2.0 * delta_safe
    h3 = (gc - rc) + 4.0 * delta_safe
    # torch.max returns the first maximal index on ties -> priority r, then g, then b.
    h = jnp.where(r == maxc, h1, jnp.where(g == maxc, h2, h3))
    h = h / delta_safe
    h = h / 6.0
    h = h - jnp.floor(h)              # == (h / 6.0) % 1.0 (remainder w/ divisor 1.0)
    h = jnp.float32(2.0 * math.pi) * h
    return h, s, v


def _hsv_loss_kernel(x_ref, out_ref, acc_ref, *, loss_weight, inv_n):
    # x_ref: (3, 2, TN) tile -- (RGB channel, {width col 1, width col 2}, pixels).
    i = pl.program_id(0)

    @pl.when(i == 0)
    def _():
        acc_ref[0] = jnp.float32(0.0)

    r = x_ref[0]                      # (2, TN), lane-dense
    g = x_ref[1]
    bl = x_ref[2]

    h, s, v = _rgb_to_hsv_channels(r, g, bl)

    # cap_prior = hsv(width col 2) - hsv(width col 1), per HSV channel.
    cap_h = h[1:2, :] - h[0:1, :]     # (1, TN)
    cap_s = s[1:2, :] - s[0:1, :]
    cap_v = v[1:2, :] - v[0:1, :]
    acc_ref[0] += jnp.sum(cap_h * cap_h + cap_s * cap_s + cap_v * cap_v)

    @pl.when(i == pl.num_programs(0) - 1)
    def _():
        out_ref[0, 0] = jnp.float32(loss_weight) * acc_ref[0] * jnp.float32(inv_n)


def hsv_loss(pred, target=None, loss_weight=1.0):
    """Pallas implementation of HSVLoss.forward (target is unused, as in the module)."""
    del target
    pred = pred.astype(jnp.float32)
    B, C, H, W = pred.shape
    assert C == 3, "HSVLoss expects RGB input (B, 3, H, W)"
    assert W >= 3, "HSVLoss indexes width columns 1 and 2; need W >= 3"

    # Only width columns 1 and 2 reach the loss; slice before the kernel so the
    # DMA and the HSV math never touch the rest of the image.
    cols = pred[:, :, :, 1:3]                              # (B, 3, H, 2)
    # Lane-dense layout: (channel, {col1, col2}, B*H) -- long pixel axis last.
    x = jnp.transpose(cols, (1, 3, 0, 2)).reshape(3, 2, B * H)

    N = B * H
    LANE = 128
    MAX_TILE = 64 * 1024              # pixels per grid step -> ~1.5 MiB f32 block
    n_pad128 = ((N + LANE - 1) // LANE) * LANE
    TN = min(n_pad128, MAX_TILE)
    N_pad = ((N + TN - 1) // TN) * TN
    if N_pad != N:
        # Zero padding: identical columns -> cap_prior == 0 -> no effect on the sum.
        x = jnp.pad(x, ((0, 0), (0, 0), (0, N_pad - N)))
    num_tiles = N_pad // TN           # usually 1 for realistic shapes

    inv_n = 1.0 / float(3 * N)        # MSE mean over cap_prior of shape (B, 3, H)

    kernel = functools.partial(
        _hsv_loss_kernel, loss_weight=float(loss_weight), inv_n=inv_n)

    out = pl.pallas_call(
        kernel,
        out_shape=jax.ShapeDtypeStruct((1, 1), jnp.float32),
        grid_spec=pltpu.PrefetchScalarGridSpec(
            num_scalar_prefetch=0,
            grid=(num_tiles,),
            in_specs=[pl.BlockSpec((3, 2, TN), lambda i: (0, 0, i))],
            out_specs=pl.BlockSpec(memory_space=pltpu.SMEM),
            scratch_shapes=[pltpu.SMEM((1,), jnp.float32)],
        ),
        # Carried SMEM accumulator across tiles -> must stay "arbitrary"
        # (sequential); with the sliced input num_tiles is ~1, so this costs
        # nothing. A parallel partial-sum variant (for v7x dual-TC) is only
        # worth it for extremely large B*H.
        compiler_params=pltpu.CompilerParams(
            dimension_semantics=("arbitrary",)),
    )(x)
    return out[0, 0]


def hsv_loss_ref(pred, loss_weight=1.0):
    """Pure-JAX reference mirroring kornia.rgb_to_hsv + the module's forward."""
    pred = pred.astype(jnp.float32)
    r, g, b = pred[:, 0], pred[:, 1], pred[:, 2]
    h, s, v = _rgb_to_hsv_channels(r, g, b)
    hsv = jnp.stack([h, s, v], axis=1)             # (B, 3, H, W)
    cap = hsv[:, :, :, 2] - hsv[:, :, :, 1]        # (B, 3, H)
    return loss_weight * jnp.mean(cap * cap)


if __name__ == "__main__":
    key = jax.random.PRNGKey(0)
    k_pred, k_tgt = jax.random.split(key)
    B, C, H, W = 2, 3, 16, 16
    pred = jax.random.uniform(k_pred, (B, C, H, W), dtype=jnp.float32)
    target = jax.random.uniform(k_tgt, (B, C, H, W), dtype=jnp.float32)  # unused, as in module

    loss = hsv_loss(pred, target, loss_weight=1.0)
    loss = jax.block_until_ready(loss)

    ref = jax.block_until_ready(hsv_loss_ref(pred, loss_weight=1.0))
    assert jnp.allclose(loss, ref, rtol=1e-5, atol=1e-6), (loss, ref)

    print("KERNEL_OK")
</pallas_src>

<mosaic_0001>
module attributes {stable_mosaic.version = 11 : i64} {
  func.func @_hsv_loss_kernel(%arg0: i32, %arg1: memref<3x2x128xf32, #tpu.memory_space<vmem>>, %arg2: memref<1x1xf32, #tpu.memory_space<smem>>, %arg3: memref<1xf32, #tpu.memory_space<smem>>) attributes {dimension_semantics = [#tpu.dimension_semantics<arbitrary>], iteration_bounds = array<i64: 1>, scalar_prefetch = 0 : i64, scratch_operands = 1 : i64, tpu.core_type = #tpu.core_type<tc>, window_params = [{transform_indices = @transform_0, window_bounds = array<i64: 3, 2, 128>}, {transform_indices = @transform_1, window_bounds = array<i64: 1, 1>}]} {
    %c0_i32 = arith.constant 0 : i32
    %0 = arith.cmpi eq, %arg0, %c0_i32 : i32
    %1 = arith.extui %0 : i1 to i32
    %c0_i32_0 = arith.constant 0 : i32
    %2 = arith.cmpi ne, %1, %c0_i32_0 : i32
    scf.if %2 {
      %cst_18 = arith.constant 0.000000e+00 : f32
      %c0_19 = arith.constant 0 : index
      %68 = memref.load %arg3[%c0_19] : memref<1xf32, #tpu.memory_space<smem>>
      memref.store %cst_18, %arg3[%c0_19] : memref<1xf32, #tpu.memory_space<smem>>
    } else {
    }
    %c0 = arith.constant 0 : index
    %c0_1 = arith.constant 0 : index
    %c0_2 = arith.constant 0 : index
    %3 = vector.load %arg1[%c0, %c0_1, %c0_2] : memref<3x2x128xf32, #tpu.memory_space<vmem>>, vector<1x2x128xf32>
    %4 = vector.shape_cast %3 : vector<1x2x128xf32> to vector<2x128xf32>
    %c1 = arith.constant 1 : index
    %c0_3 = arith.constant 0 : index
    %c0_4 = arith.constant 0 : index
    %5 = vector.load %arg1[%c1, %c0_3, %c0_4] : memref<3x2x128xf32, #tpu.memory_space<vmem>>, vector<1x2x128xf32>
    %6 = vector.shape_cast %5 : vector<1x2x128xf32> to vector<2x128xf32>
    %c2 = arith.constant 2 : index
    %c0_5 = arith.constant 0 : index
    %c0_6 = arith.constant 0 : index
    %7 = vector.load %arg1[%c2, %c0_5, %c0_6] : memref<3x2x128xf32, #tpu.memory_space<vmem>>, vector<1x2x128xf32>
    %8 = vector.shape_cast %7 : vector<1x2x128xf32> to vector<2x128xf32>
    %9 = arith.maximumf %4, %6 : vector<2x128xf32>
    %10 = arith.maximumf %9, %8 : vector<2x128xf32>
    %11 = arith.minimumf %4, %6 : vector<2x128xf32>
    %12 = arith.minimumf %11, %8 : vector<2x128xf32>
    %13 = arith.subf %10, %12 : vector<2x128xf32>
    %cst = arith.constant 9.99999993E-9 : f32
    %14 = vector.broadcast %cst : f32 to vector<2x128xf32>
    %15 = arith.addf %10, %14 : vector<2x128xf32>
    %16 = arith.divf %13, %15 : vector<2x128xf32>
    %cst_7 = arith.constant 0.000000e+00 : f32
    %17 = vector.broadcast %cst_7 : f32 to vector<2x128xf32>
    %18 = arith.cmpf oeq, %13, %17 : vector<2x128xf32>
    %cst_8 = arith.constant 1.000000e+00 : f32
    %19 = vector.broadcast %cst_8 : f32 to vector<2x128xf32>
    %20 = arith.select %18, %19, %13 : vector<2x128xi1>, vector<2x128xf32>
    %21 = arith.subf %10, %4 : vector<2x128xf32>
    %22 = arith.subf %10, %6 : vector<2x128xf32>
    %23 = arith.subf %10, %8 : vector<2x128xf32>
    %24 = arith.subf %23, %22 : vector<2x128xf32>
    %25 = arith.subf %21, %23 : vector<2x128xf32>
    %cst_9 = arith.constant 2.000000e+00 : f32
    %26 = vector.broadcast %cst_9 : f32 to vector<2x128xf32>
    %27 = arith.mulf %26, %20 : vector<2x128xf32>
    %28 = arith.addf %25, %27 : vector<2x128xf32>
    %29 = arith.subf %22, %21 : vector<2x128xf32>
    %cst_10 = arith.constant 4.000000e+00 : f32
    %30 = vector.broadcast %cst_10 : f32 to vector<2x128xf32>
    %31 = arith.mulf %30, %20 : vector<2x128xf32>
    %32 = arith.addf %29, %31 : vector<2x128xf32>
    %33 = arith.cmpf oeq, %4, %10 : vector<2x128xf32>
    %34 = arith.cmpf oeq, %6, %10 : vector<2x128xf32>
    %35 = arith.select %34, %28, %32 : vector<2x128xi1>, vector<2x128xf32>
    %36 = arith.select %33, %24, %35 : vector<2x128xi1>, vector<2x128xf32>
    %37 = arith.divf %36, %20 : vector<2x128xf32>
    %cst_11 = arith.constant 6.000000e+00 : f32
    %38 = vector.broadcast %cst_11 : f32 to vector<2x128xf32>
    %39 = arith.divf %37, %38 : vector<2x128xf32>
    %40 = math.floor %39 : vector<2x128xf32>
    %41 = arith.subf %39, %40 : vector<2x128xf32>
    %cst_12 = arith.constant 6.28318548 : f32
    %42 = vector.broadcast %cst_12 : f32 to vector<2x128xf32>
    %43 = arith.mulf %42, %41 : vector<2x128xf32>
    %44 = vector.extract_strided_slice %43 {offsets = [1, 0], sizes = [1, 128], strides = [1, 1]} : vector<2x128xf32> to vector<1x128xf32>
    %45 = vector.extract_strided_slice %43 {offsets = [0, 0], sizes = [1, 128], strides = [1, 1]} : vector<2x128xf32> to vector<1x128xf32>
    %46 = arith.subf %44, %45 : vector<1x128xf32>
    %47 = vector.extract_strided_slice %16 {offsets = [1, 0], sizes = [1, 128], strides = [1, 1]} : vector<2x128xf32> to vector<1x128xf32>
    %48 = vector.extract_strided_slice %16 {offsets = [0, 0], sizes = [1, 128], strides = [1, 1]} : vector<2x128xf32> to vector<1x128xf32>
    %49 = arith.subf %47, %48 : vector<1x128xf32>
    %50 = vector.extract_strided_slice %10 {offsets = [1, 0], sizes = [1, 128], strides = [1, 1]} : vector<2x128xf32> to vector<1x128xf32>
    %51 = vector.extract_strided_slice %10 {offsets = [0, 0], sizes = [1, 128], strides = [1, 1]} : vector<2x128xf32> to vector<1x128xf32>
    %52 = arith.subf %50, %51 : vector<1x128xf32>
    %c0_13 = arith.constant 0 : index
    %53 = memref.load %arg3[%c0_13] : memref<1xf32, #tpu.memory_space<smem>>
    %54 = arith.mulf %46, %46 : vector<1x128xf32>
    %55 = arith.mulf %49, %49 : vector<1x128xf32>
    %56 = arith.addf %54, %55 : vector<1x128xf32>
    %57 = arith.mulf %52, %52 : vector<1x128xf32>
    %58 = arith.addf %56, %57 : vector<1x128xf32>
    %59 = vector.shape_cast %58 : vector<1x128xf32> to vector<1x1x128xf32>
    %cst_14 = arith.constant dense<0.000000e+00> : vector<1xf32>
    %60 = vector.multi_reduction <add>, %59, %cst_14 [1, 2] : vector<1x1x128xf32> to vector<1xf32>
    %61 = vector.shape_cast %60 : vector<1xf32> to vector<1x1x1xf32>
    %62 = vector.extract %61[0, 0, 0] : f32 from vector<1x1x1xf32>
    %63 = arith.addf %53, %62 : f32
    %c0_15 = arith.constant 0 : index
    %64 = memref.load %arg3[%c0_15] : memref<1xf32, #tpu.memory_space<smem>>
    memref.store %63, %arg3[%c0_15] : memref<1xf32, #tpu.memory_space<smem>>
    %c0_i32_16 = arith.constant 0 : i32
    %65 = arith.cmpi eq, %arg0, %c0_i32_16 : i32
    %66 = arith.extui %65 : i1 to i32
    %c0_i32_17 = arith.constant 0 : i32
    %67 = arith.cmpi ne, %66, %c0_i32_17 : i32
    scf.if %67 {
      %c0_18 = arith.constant 0 : index
      %68 = memref.load %arg3[%c0_18] : memref<1xf32, #tpu.memory_space<smem>>
      %cst_19 = arith.constant 1.000000e+00 : f32
      %69 = arith.mulf %cst_19, %68 : f32
      %cst_20 = arith.constant 0.010416667 : f32
      %70 = arith.mulf %69, %cst_20 : f32
      %c0_21 = arith.constant 0 : index
      %c0_22 = arith.constant 0 : index
      %71 = memref.load %arg2[%c0_21, %c0_22] : memref<1x1xf32, #tpu.memory_space<smem>>
      memref.store %70, %arg2[%c0_21, %c0_22] : memref<1x1xf32, #tpu.memory_space<smem>>
    } else {
    }
    return
  }
  func.func @transform_0(%arg0: i32) -> (i32, i32, i32) {
    %c0_i32 = arith.constant 0 : i32
    %c0_i32_0 = arith.constant 0 : i32
    %c0_i32_1 = arith.constant 0 : i32
    return %c0_i32, %c0_i32_0, %arg0 : i32, i32, i32
  }
  func.func @transform_1(%arg0: i32) -> (i32, i32) {
    %c0_i32 = arith.constant 0 : i32
    %c0_i32_0 = arith.constant 0 : i32
    %c0_i32_1 = arith.constant 0 : i32
    return %c0_i32, %c0_i32_0 : i32, i32
  }
}

</mosaic_0001>

<llo_original>
// kernel: tpu_custom_call.1
$region0: #{tpu_custom_call.1}
  #allocation0 [shape = 'u32[]', space=smem, size = 0x4, offset = 0x4, fixed_abs, tag = 'smem constant byte address 0x4 - core index']
  #allocation1 [shape = 'u32[72,128]{1,0:T(1,128)}', space=vmem, size = 0x9000, scoped, tag = 'internal scratch']
  #allocation2 [shape = 'f32[1]{0:T(128)}', space=smem, size = 0x200, scoped, tag = 'scratch operand']
  %s0 = inlined_call_operand.hbm [shape: f32[3,2,128], index: 0, kind: input, shape index: {}]
  %s1 = inlined_call_operand.hbm [shape: f32[1,1], index: 1, kind: output, shape index: {}]
  %s2 = sld [smem:[#allocation0]]
  $region26: #{tpu_custom_call.1} parent=0
    _
  %s4 = ssub.s32 1, %s2
  %s5 = scalar_select 0, %s4, %s2
  $region1: #{tpu_custom_call.1} parent=0
    #allocation3 [shape = 'u8[3072]{0}', space=vmem, size = 0xc00, scoped, tag = 'input window, operand 0, single buffered']
    #allocation4 [shape = 's32[1]{0}', space=sflag, size = 0x4, scoped, tag = 'scoped memory for tpu_custom_call.1']
    #allocation5 [shape = 's32[1]{0}', space=sflag, size = 0x4, scoped, tag = 'scoped memory for tpu_custom_call.1']
    #allocation6 [shape = 'u8[512]{0}', space=smem, size = 0x200, scoped, tag = 'output window, operand 0, single buffered']
    %6 = vsyncpa [#allocation4], 0
    %7 = vsyncpa [#allocation5], 0
    // Predicated region
    $region2: #{tpu_custom_call.1} parent=1 // pred_check
      _
    $region3: #{tpu_custom_call.1} parent=1 // pred_check_branch
      %9 = sbr.rel (0) target = $region5
    $region4: #{tpu_custom_call.1} parent=1 // pred_region
      %11 = vsyncadd [#allocation4], 0
      %s12 = sshll.u32 %s0, 4
      %s13 = int_to_ptr.hbm [resolvable:$true] %s12
      %s14 = sshll.u32 [#allocation3], 4
      %s15 = int_to_ptr.vmem [resolvable:$true] %s14
      %20 = dma.hbm_to_vmem [thread:$0]  %s13, 96, %s15, [#allocation4], 32, 32, 2
    $region5: #{tpu_custom_call.1} parent=1 // pred_fallthru
      _
    // Predicated region
    $region6: #{tpu_custom_call.1} parent=1 // pred_check
      _
    $region7: #{tpu_custom_call.1} parent=1 // pred_check_branch
      %22 = sbr.rel (0) target = $region9
    $region8: #{tpu_custom_call.1} parent=1 // pred_region
      %24 = dma.done [#allocation4], 96
    $region9: #{tpu_custom_call.1} parent=1 // pred_fallthru
      _
    %p25 = scmp.eq.s32.totalorder 0, 0
    // Predicated region
    $region10: #{tpu_custom_call.1} parent=1 // pred_check
      %p26 = pneg %p25
    $region11: #{tpu_custom_call.1} parent=1 // pred_check_branch
      %28 = sbr.rel (%p26) target = $region13
    $region12: #{tpu_custom_call.1} parent=1 // pred_region
      %s29 = scalar_lea.smem [#allocation2], 0
      %30 = sst [smem:[%s29]] 0.0
    $region13: #{tpu_custom_call.1} parent=1 // pred_fallthru
      _
    %v31 = vld [vmem:[#allocation3] sm:$0x3]
    %s32 = scalar_lea.vmem [#allocation3], 2
    %v33 = vld [vmem:[%s32] sm:$0x3]
    %s34 = scalar_lea.vmem [#allocation3], 4
    %v35 = vld [vmem:[%s34] sm:$0x3]
    %v36 = vmax.f32 %v31, %v33
    %v37 = vmax.f32 %v36, %v35
    %v38 = vmin.f32 %v31, %v33
    %v39 = vmin.f32 %v38, %v35
    %v40 = vsub.f32 %v37, %v39
    %v41 = vadd.f32 %v37, 1e-08
    %v42 = vrcp.pop %v41
    %v43 = vmul.f32 %v41, %v42
    %v44 = vsub.f32 1.0, %v43
    %v45 = vmul.f32 %v42, %v44
    %v46 = vadd.f32 %v42, %v45
    %vm47 = vweird.f32 %v41
    %vm48 = vweird.f32 %v42
    %vm49 = vmor %vm47, %vm48
    %v50 = vsel %vm49, %v42, %v46
    %v51 = vand.u32 2147483647, %v41
    %vm52 = vcmp.eq.f32.partialorder %v51, 8.507059e+37
    %v53 = vand.u32 %v41, 2147483648
    %v54 = vor.u32 1.1754944e-38, %v53
    %v55 = vsel %vm52, %v54, %v50
    %v56 = vmul.f32 %v40, %v55
    %vm57 = vcmp.eq.f32.partialorder %v40, 0.0
    %v58 = vsel %vm57, 1.0, %v40
    %v59 = vsub.f32 %v37, %v31
    %v60 = vsub.f32 %v37, %v33
    %v61 = vsub.f32 %v37, %v35
    %v62 = vsub.f32 %v61, %v60
    %v63 = vsub.f32 %v59, %v61
    %v64 = vmul.f32 %v58, 2.0
    %v65 = vadd.f32 %v63, %v64
    %v66 = vsub.f32 %v60, %v59
    %v67 = vmul.f32 %v58, 4.0
    %v68 = vadd.f32 %v66, %v67
    %vm69 = vcmp.eq.f32.partialorder %v31, %v37
    %vm70 = vcmp.eq.f32.partialorder %v33, %v37
    %v71 = vsel %vm70, %v65, %v68
    %v72 = vsel %vm69, %v62, %v71
    %v73 = vrcp.pop %v58
    %v74 = vmul.f32 %v58, %v73
    %v75 = vsub.f32 1.0, %v74
    %v76 = vmul.f32 %v73, %v75
    %v77 = vadd.f32 %v73, %v76
    %vm78 = vweird.f32 %v58
    %vm79 = vweird.f32 %v73
    %vm80 = vmor %vm78, %vm79
    %v81 = vsel %vm80, %v73, %v77
    %v82 = vand.u32 2147483647, %v58
    %vm83 = vcmp.eq.f32.partialorder %v82, 8.507059e+37
    %v84 = vand.u32 %v58, 2147483648
    %v85 = vor.u32 1.1754944e-38, %v84
    %v86 = vsel %vm83, %v85, %v81
    %v87 = vmul.f32 %v72, %v86
    %v88 = vrcp.pop 6.0
    %v89 = vmul.f32 6.0, %v88
    %v90 = vsub.f32 1.0, %v89
    %v91 = vmul.f32 %v88, %v90
    %v92 = vadd.f32 %v88, %v91
    %vm93 = vweird.f32 %v88
    %v94 = vsel %vm93, %v88, %v92
    %v95 = vmul.f32 %v87, %v94
    %v96 = vfloor.f32 %v95
    %v97 = vsub.f32 %v95, %v96
    %v98 = vmul.f32 %v97, 6.2831855
    %v100 = vrot.slane %v98, 7
    %v102 = vsub.f32 %v98, %v100
    %v104 = vrot.slane %v56, 7
    %v106 = vsub.f32 %v56, %v104
    %v108 = vrot.slane %v37, 7
    %v110 = vsub.f32 %v37, %v108
    %s111 = sld [smem:[#allocation2]]
    %v112 = vmul.f32 %v102, %v102
    %v113 = vmul.f32 %v106, %v106
    %v114 = vadd.f32 %v112, %v113
    %v115 = vmul.f32 %v110, %v110
    %v116 = vadd.f32 %v114, %v115
    %v118 = vrot.slane %v116, 1
    %vm120 = vcmask 1040384
    %v121 = vsel %vm120, %v118, 0.0
    %122 = vadd.xlane.f32.xlu0 %v121
    %v123 = vpop.xlane.xlu0 %122
    %v124 = vrot.slane %v123, 4
    %v125 = vadd.f32 %v123, %v124
    %v126 = vrot.slane %v125, 2
    %v127 = vadd.f32 %v125, %v126
    %v128 = vrot.slane %v127, 1
    %v129 = vadd.f32 %v127, %v128
    %s130 = vtos %v129
    %s131 = sadd.f32 %s111, %s130
    %s132 = scalar_lea.smem [#allocation2], 0
    %133 = sst [smem:[%s132]] %s131
    // Predicated region
    $region14: #{tpu_custom_call.1} parent=1 // pred_check
      %p134 = pneg %p25
    $region15: #{tpu_custom_call.1} parent=1 // pred_check_branch
      %136 = sbr.rel (%p134) target = $region17
    $region16: #{tpu_custom_call.1} parent=1 // pred_region
      %s137 = sld [smem:[#allocation2]]
      %s138 = smul.f32 %s137, 0.010416667
      %s139 = scalar_lea.smem [#allocation6], 0
      %140 = sst [smem:[%s139]] %s138
    $region17: #{tpu_custom_call.1} parent=1 // pred_fallthru
      _
    // Predicated region
    $region18: #{tpu_custom_call.1} parent=1 // pred_check
      _
    $region19: #{tpu_custom_call.1} parent=1 // pred_check_branch
      %142 = sbr.rel (0) target = $region21
    $region20: #{tpu_custom_call.1} parent=1 // pred_region
      %144 = vsyncadd [#allocation5], 0
      %s146 = sshll.u32 %s1, 4
      %s147 = int_to_ptr.hbm [resolvable:$true] %s146
      %149 = dma.smem_to_hbm [#allocation6], 16, %s147, [#allocation5]
    $region21: #{tpu_custom_call.1} parent=1 // pred_fallthru
      _
    // Predicated region
    $region22: #{tpu_custom_call.1} parent=1 // pred_check
      _
    $region23: #{tpu_custom_call.1} parent=1 // pred_check_branch
      %151 = sbr.rel (0) target = $region25
    $region24: #{tpu_custom_call.1} parent=1 // pred_region
      %153 = dma.done [#allocation5], 16
    $region25: #{tpu_custom_call.1} parent=1 // pred_fallthru
      _
    %154 = sfence
    %155 = vsyncpa [#allocation4], 1
    %156 = vsyncpa [#allocation5], 1

</llo_original>
